<compile_context>
chip_gen: v6e
topology: v6e:2x2x1
jax: 0.10.0
libtpu: 0.0.40
codegen_flags: <defaults>
</compile_context>

<pallas_src>
import functools

import jax
import jax.numpy as jnp
from jax import lax
from jax.experimental import pallas as pl
from jax.experimental.pallas import tpu as pltpu

BN_EPS = 1e-5


def _nav_topic_decoder_kernel(
    x_ref,        # (B, T)        proportions (full batch, full contraction)
    w_ref,        # (T, tile_f)   packed+padded linear weight tile
    b_ref,        # (1, tile_f)   packed+padded linear bias tile
    g_ref,        # (1, tile_f)   packed+padded BN gamma tile
    be_ref,       # (1, tile_f)   packed+padded BN beta tile
    out_ref,      # (B, tile_f)   output tile: bn_mu  OR  exp(0.5*bn_sigma)
    *,
    n_mu_blocks,  # static: blocks [0, n_mu_blocks) are mu, the rest are sigma
):
    x = x_ref[...].astype(jnp.float32)
    # Every feature block sees the FULL batch, so block batch == true batch and
    # the BN statistics below are exact.
    inv_b = 1.0 / float(x.shape[0])

    # Fused Linear for this feature tile: x @ W_tile + b_tile  (single MXU pass).
    h = jnp.dot(x, w_ref[...].astype(jnp.float32),
                preferred_element_type=jnp.float32) + b_ref[...].astype(jnp.float32)

    # BatchNorm1d (training mode), two-pass centered statistics per feature.
    mean = jnp.sum(h, axis=0, keepdims=True) * inv_b
    centered = h - mean
    var = jnp.sum(centered * centered, axis=0, keepdims=True) * inv_b   # biased
    scale = g_ref[...].astype(jnp.float32) * lax.rsqrt(var + BN_EPS)
    y = centered * scale + be_ref[...].astype(jnp.float32)              # 1 mul + 1 add

    # Per-tile *scalar* decision: this block is entirely mu or entirely sigma.
    is_sigma = pl.program_id(0) >= n_mu_blocks

    @pl.when(is_sigma)
    def _():
        out_ref[...] = jnp.exp(0.5 * y).astype(out_ref.dtype)

    @pl.when(jnp.logical_not(is_sigma))
    def _():
        out_ref[...] = y.astype(out_ref.dtype)


def prepare_decoder_params(params):
    """One-time packing: pad each head to a 128-multiple and concatenate along
    the feature axis -> [mu | pad | sigma | pad].  Called OUTSIDE the hot path."""
    E = params["w_mu"].shape[1]
    e_pad = ((E + 127) // 128) * 128
    pad = e_pad - E

    def padf(a):  # zero-pad feature axis (gamma pad = 0 zeroes padded lanes)
        return jnp.pad(a, ((0, 0), (0, pad))) if pad else a

    return {
        "w":     jnp.concatenate([padf(params["w_mu"]),     padf(params["w_sigma"])],     axis=1),
        "bias":  jnp.concatenate([padf(params["b_mu"]),     padf(params["b_sigma"])],     axis=1),
        "gamma": jnp.concatenate([padf(params["gamma_mu"]), padf(params["gamma_sigma"])], axis=1),
        "beta":  jnp.concatenate([padf(params["beta_mu"]),  padf(params["beta_sigma"])],  axis=1),
        "emb_dim": E,
        "e_pad": e_pad,
    }
    # TODO(synk): optionally store "w" in bf16 (f32 MXU accumulation) to halve the
    #             dominant weight HBM stream when weights tolerate bf16.


def nav_topic_decoder(proportions, packed):
    """proportions: (B, num_topics) f32; packed: prepare_decoder_params(...) output.
    Returns (mu, sigma), each (B, emb_dim) f32."""
    B, T = proportions.shape
    E, e_pad = packed["emb_dim"], packed["e_pad"]
    f_pad = 2 * e_pad

    # ---- VMEM budget: resident x + double-buffered weight/output/vector tiles ----
    def vmem_need(tf):
        return (2 * B * T * 4          # x (double-buffered input)
                + 2 * T * tf * 4       # weight tile, double-buffered
                + 2 * B * tf * 4       # output tile, double-buffered
                + 6 * tf * 4)          # bias/gamma/beta tiles, double-buffered

    # Largest tile that divides e_pad and fits a v7x-safe (24 MiB) working set.
    tile_f = 128
    for cand in (2048, 1024, 512, 256, 128):
        if e_pad % cand == 0 and vmem_need(cand) <= (24 << 20):
            tile_f = cand
            break

    n_mu_blocks = e_pad // tile_f
    grid = (2 * n_mu_blocks,)          # >= 2 blocks: both v7x TensorCores usable.

    vmem_limit = min(max(2 * vmem_need(tile_f) + (4 << 20), 16 << 20), 64 << 20)

    kernel = functools.partial(_nav_topic_decoder_kernel, n_mu_blocks=n_mu_blocks)

    out = pl.pallas_call(
        kernel,
        out_shape=jax.ShapeDtypeStruct((B, f_pad), jnp.float32),
        grid=grid,
        in_specs=[
            pl.BlockSpec((B, T), lambda j: (0, 0)),          # full batch every block
            pl.BlockSpec((T, tile_f), lambda j: (0, j)),
            pl.BlockSpec((1, tile_f), lambda j: (0, j)),
            pl.BlockSpec((1, tile_f), lambda j: (0, j)),
            pl.BlockSpec((1, tile_f), lambda j: (0, j)),
        ],
        out_specs=pl.BlockSpec((B, tile_f), lambda j: (0, j)),
        compiler_params=pltpu.CompilerParams(
            dimension_semantics=("parallel",),
            vmem_limit_bytes=vmem_limit,
        ),
    )(proportions, packed["w"], packed["bias"], packed["gamma"], packed["beta"])

    # Wrapper-side split of the lane-dense packed output (layout plumbing only).
    mu = out[:, :E]
    sigma = out[:, e_pad:e_pad + E]
    return mu, sigma


def init_params(key, num_topics, embedding_dim):
    """Deterministic synthetic parameters matching the PyTorch module shapes."""
    ks = jax.random.split(key, 4)
    bound = 1.0 / jnp.sqrt(num_topics)
    # nn.Linear(num_topics, embedding_dim): weight (E, T) -> stored transposed (T, E)
    w_mu = jax.random.uniform(ks[0], (num_topics, embedding_dim),
                              minval=-bound, maxval=bound, dtype=jnp.float32)
    b_mu = jax.random.uniform(ks[1], (1, embedding_dim),
                              minval=-bound, maxval=bound, dtype=jnp.float32)
    w_sg = jax.random.uniform(ks[2], (num_topics, embedding_dim),
                              minval=-bound, maxval=bound, dtype=jnp.float32)
    b_sg = jax.random.uniform(ks[3], (1, embedding_dim),
                              minval=-bound, maxval=bound, dtype=jnp.float32)
    # nn.BatchNorm1d default init: gamma=1, beta=0
    ones = jnp.ones((1, embedding_dim), jnp.float32)
    zeros = jnp.zeros((1, embedding_dim), jnp.float32)
    return {
        "w_mu": w_mu, "b_mu": b_mu, "gamma_mu": ones, "beta_mu": zeros,
        "w_sigma": w_sg, "b_sigma": b_sg, "gamma_sigma": ones, "beta_sigma": zeros,
    }


def _reference(proportions, params):
    def lin_bn(w, b, g, be):
        h = proportions @ w + b
        mean = h.mean(axis=0, keepdims=True)
        var = ((h - mean) ** 2).mean(axis=0, keepdims=True)
        return g * (h - mean) / jnp.sqrt(var + BN_EPS) + be
    mu = lin_bn(params["w_mu"], params["b_mu"], params["gamma_mu"], params["beta_mu"])
    sg = jnp.exp(0.5 * lin_bn(params["w_sigma"], params["b_sigma"],
                              params["gamma_sigma"], params["beta_sigma"]))
    return mu, sg


if __name__ == "__main__":
    B, NUM_TOPICS, EMB_DIM = 8, 16, 32

    key = jax.random.PRNGKey(0)
    k_x, k_p = jax.random.split(key)

    # Topic proportions (softmax so they look like proportions).
    logits = jax.random.normal(k_x, (B, NUM_TOPICS), dtype=jnp.float32)
    proportions = jax.nn.softmax(logits, axis=-1)

    params = init_params(k_p, NUM_TOPICS, EMB_DIM)
    packed = prepare_decoder_params(params)          # one-time packing (not per-call)

    mu, sigma = nav_topic_decoder(proportions, packed)
    jax.block_until_ready((mu, sigma))

    mu_ref, sigma_ref = _reference(proportions, params)
    assert mu.shape == (B, EMB_DIM) and sigma.shape == (B, EMB_DIM)
    assert jnp.allclose(mu, mu_ref, atol=1e-4, rtol=1e-4)
    assert jnp.allclose(sigma, sigma_ref, atol=1e-4, rtol=1e-4)

    print("KERNEL_OK")
</pallas_src>

<mosaic_0001>
module attributes {stable_mosaic.version = 11 : i64} {
  func.func @_nav_topic_decoder_kernel(%arg0: i32, %arg1: memref<8x16xf32, #tpu.memory_space<vmem>>, %arg2: memref<16x128xf32, #tpu.memory_space<vmem>>, %arg3: memref<1x128xf32, #tpu.memory_space<vmem>>, %arg4: memref<1x128xf32, #tpu.memory_space<vmem>>, %arg5: memref<1x128xf32, #tpu.memory_space<vmem>>, %arg6: memref<8x128xf32, #tpu.memory_space<vmem>>) attributes {dimension_semantics = [#tpu.dimension_semantics<parallel>], iteration_bounds = array<i64: 2>, scalar_prefetch = 0 : i64, scratch_operands = 0 : i64, tpu.core_type = #tpu.core_type<tc>, window_params = [{pipeline_mode = #tpu.pipeline_mode<synchronous>, transform_indices = @transform_0, window_bounds = array<i64: 8, 16>}, {transform_indices = @transform_1, window_bounds = array<i64: 16, 128>}, {transform_indices = @transform_2, window_bounds = array<i64: 1, 128>}, {transform_indices = @transform_3, window_bounds = array<i64: 1, 128>}, {transform_indices = @transform_4, window_bounds = array<i64: 1, 128>}, {transform_indices = @transform_5, window_bounds = array<i64: 8, 128>}]} {
    %c0 = arith.constant 0 : index
    %c0_0 = arith.constant 0 : index
    %0 = vector.load %arg1[%c0, %c0_0] : memref<8x16xf32, #tpu.memory_space<vmem>>, vector<8x16xf32>
    %c0_1 = arith.constant 0 : index
    %c0_2 = arith.constant 0 : index
    %1 = vector.load %arg2[%c0_1, %c0_2] : memref<16x128xf32, #tpu.memory_space<vmem>>, vector<16x128xf32>
    %cst = arith.constant dense<0.000000e+00> : vector<8x128xf32>
    %2 = tpu.matmul %0, %1, %cst {dimension_numbers = #tpu.dot_dimension_numbers<[1], [0], [0], [1], [0, 0, 1, 1], [], []>} : vector<8x16xf32>, vector<16x128xf32>, vector<8x128xf32> -> vector<8x128xf32>
    %c0_3 = arith.constant 0 : index
    %c0_4 = arith.constant 0 : index
    %3 = vector.load %arg3[%c0_3, %c0_4] : memref<1x128xf32, #tpu.memory_space<vmem>>, vector<1x128xf32>
    %4 = vector.broadcast %3 : vector<1x128xf32> to vector<8x128xf32>
    %5 = arith.addf %2, %4 : vector<8x128xf32>
    %cst_5 = arith.constant dense<0.000000e+00> : vector<128xf32>
    %6 = vector.multi_reduction <add>, %5, %cst_5 [0] : vector<8x128xf32> to vector<128xf32>
    %7 = vector.shape_cast %6 : vector<128xf32> to vector<1x128xf32>
    %cst_6 = arith.constant 1.250000e-01 : f32
    %8 = vector.broadcast %cst_6 : f32 to vector<1x128xf32>
    %9 = arith.mulf %7, %8 : vector<1x128xf32>
    %10 = vector.broadcast %9 : vector<1x128xf32> to vector<8x128xf32>
    %11 = arith.subf %5, %10 : vector<8x128xf32>
    %12 = arith.mulf %11, %11 : vector<8x128xf32>
    %cst_7 = arith.constant dense<0.000000e+00> : vector<128xf32>
    %13 = vector.multi_reduction <add>, %12, %cst_7 [0] : vector<8x128xf32> to vector<128xf32>
    %14 = vector.shape_cast %13 : vector<128xf32> to vector<1x128xf32>
    %cst_8 = arith.constant 1.250000e-01 : f32
    %15 = vector.broadcast %cst_8 : f32 to vector<1x128xf32>
    %16 = arith.mulf %14, %15 : vector<1x128xf32>
    %c0_9 = arith.constant 0 : index
    %c0_10 = arith.constant 0 : index
    %17 = vector.load %arg4[%c0_9, %c0_10] : memref<1x128xf32, #tpu.memory_space<vmem>>, vector<1x128xf32>
    %cst_11 = arith.constant 9.99999974E-6 : f32
    %18 = vector.broadcast %cst_11 : f32 to vector<1x128xf32>
    %19 = arith.addf %16, %18 : vector<1x128xf32>
    %20 = math.rsqrt %19 : vector<1x128xf32>
    %21 = arith.mulf %17, %20 : vector<1x128xf32>
    %22 = vector.broadcast %21 : vector<1x128xf32> to vector<8x128xf32>
    %23 = arith.mulf %11, %22 : vector<8x128xf32>
    %c0_12 = arith.constant 0 : index
    %c0_13 = arith.constant 0 : index
    %24 = vector.load %arg5[%c0_12, %c0_13] : memref<1x128xf32, #tpu.memory_space<vmem>>, vector<1x128xf32>
    %25 = vector.broadcast %24 : vector<1x128xf32> to vector<8x128xf32>
    %26 = arith.addf %23, %25 : vector<8x128xf32>
    %c1_i32 = arith.constant 1 : i32
    %27 = arith.cmpi sge, %arg0, %c1_i32 : i32
    %28 = arith.extui %27 : i1 to i32
    %c0_i32 = arith.constant 0 : i32
    %29 = arith.cmpi ne, %28, %c0_i32 : i32
    scf.if %29 {
      %cst_15 = arith.constant 5.000000e-01 : f32
      %33 = vector.broadcast %cst_15 : f32 to vector<8x128xf32>
      %34 = arith.mulf %33, %26 : vector<8x128xf32>
      %35 = math.exp %34 : vector<8x128xf32>
      %c0_16 = arith.constant 0 : index
      %c0_17 = arith.constant 0 : index
      %36 = vector.load %arg6[%c0_16, %c0_17] : memref<8x128xf32, #tpu.memory_space<vmem>>, vector<8x128xf32>
      tpu.vector_store %arg6[%c0_16, %c0_17], %35 {strides = array<i32>} : memref<8x128xf32, #tpu.memory_space<vmem>>, vector<8x128xf32>,
    } else {
    }
    %true = arith.constant true
    %30 = arith.xori %27, %true : i1
    %31 = arith.extui %30 : i1 to i32
    %c0_i32_14 = arith.constant 0 : i32
    %32 = arith.cmpi ne, %31, %c0_i32_14 : i32
    scf.if %32 {
      %c0_15 = arith.constant 0 : index
      %c0_16 = arith.constant 0 : index
      %33 = vector.load %arg6[%c0_15, %c0_16] : memref<8x128xf32, #tpu.memory_space<vmem>>, vector<8x128xf32>
      tpu.vector_store %arg6[%c0_15, %c0_16], %26 {strides = array<i32>} : memref<8x128xf32, #tpu.memory_space<vmem>>, vector<8x128xf32>,
    } else {
    }
    return
  }
  func.func @transform_0(%arg0: i32) -> (i32, i32) {
    %c0_i32 = arith.constant 0 : i32
    %c0_i32_0 = arith.constant 0 : i32
    %c0_i32_1 = arith.constant 0 : i32
    return %c0_i32, %c0_i32_0 : i32, i32
  }
  func.func @transform_1(%arg0: i32) -> (i32, i32) {
    %c0_i32 = arith.constant 0 : i32
    %c0_i32_0 = arith.constant 0 : i32
    return %c0_i32, %arg0 : i32, i32
  }
  func.func @transform_2(%arg0: i32) -> (i32, i32) {
    %c0_i32 = arith.constant 0 : i32
    %c0_i32_0 = arith.constant 0 : i32
    return %c0_i32, %arg0 : i32, i32
  }
  func.func @transform_3(%arg0: i32) -> (i32, i32) {
    %c0_i32 = arith.constant 0 : i32
    %c0_i32_0 = arith.constant 0 : i32
    return %c0_i32, %arg0 : i32, i32
  }
  func.func @transform_4(%arg0: i32) -> (i32, i32) {
    %c0_i32 = arith.constant 0 : i32
    %c0_i32_0 = arith.constant 0 : i32
    return %c0_i32, %arg0 : i32, i32
  }
  func.func @transform_5(%arg0: i32) -> (i32, i32) {
    %c0_i32 = arith.constant 0 : i32
    %c0_i32_0 = arith.constant 0 : i32
    return %c0_i32, %arg0 : i32, i32
  }
}

</mosaic_0001>

<llo_original>
// kernel: tpu_custom_call.1
$region0: #{tpu_custom_call.1}
  #allocation0 [shape = 'u32[]', space=smem, size = 0x4, offset = 0x4, fixed_abs, tag = 'smem constant byte address 0x4 - core index']
  #allocation1 [shape = 'u32[144,128]{1,0:T(1,128)}', space=vmem, size = 0x12000, scoped, tag = 'internal scratch']
  %s0 = inlined_call_operand.hbm [shape: f32[8,16], index: 0, kind: input, shape index: {}]
  %s1 = inlined_call_operand.hbm [shape: f32[16,256], index: 1, kind: input, shape index: {}]
  %s2 = inlined_call_operand.vmem [shape: f32[1,256], index: 2, kind: input, shape index: {}]
  %s3 = inlined_call_operand.vmem [shape: f32[1,256], index: 3, kind: input, shape index: {}]
  %s4 = inlined_call_operand.vmem [shape: f32[1,256], index: 4, kind: input, shape index: {}]
  %s5 = inlined_call_operand.hbm [shape: f32[8,256], index: 5, kind: output, shape index: {}]
  %s6 = sld [smem:[#allocation0]]
  $region69: #{tpu_custom_call.1} parent=0
    _
  %s8 = ssub.s32 1, %s6
  %s9 = scalar_select 0, %s8, %s6
  $region1: #{tpu_custom_call.1} parent=0
    #allocation2 [shape = 'u8[4096]{0}', space=vmem, size = 0x1000, scoped, tag = 'input window, operand 0, single buffered']
    #allocation3 [shape = 's32[2]{0}', space=sflag, size = 0x8, scoped, tag = 'scoped memory for tpu_custom_call.1']
    #allocation4 [shape = 's32[2]{0}', space=sflag, size = 0x8, scoped, tag = 'scoped memory for tpu_custom_call.1']
    #allocation5 [shape = 'u8[16384]{0}', space=vmem, size = 0x4000, scoped, tag = 'input window, operand 1']
    #allocation6 [shape = 's32[2]{0}', space=sflag, size = 0x8, scoped, tag = 'scoped memory for tpu_custom_call.1']
    #allocation7 [shape = 'u8[8192]{0}', space=vmem, size = 0x2000, scoped, tag = 'output window, operand 0']
    %10 = vsyncpa [#allocation3], 0
    %11 = vsyncpa [#allocation6], 0
    %s12 = scalar_lea.sflag [#allocation6], 1
    %13 = vsyncpa %s12, 0
    %14 = vsyncpa [#allocation4], 0
    %s15 = scalar_lea.sflag [#allocation4], 1
    %16 = vsyncpa %s15, 0
    loop: start=0, step=1, limit=4
    $region2: #{tpu_custom_call.1} parent=1 // loop_pre_header
      _
    $region3: #{tpu_custom_call.1} parent=1 // loop_header
      %s18 = sphi 0, %s22
      %p19 = scmp.ge.s32.totalorder %s18, 4
      %s26 = sphi 0, %s26
      %s28 = sphi 0, %s26
      %s29 = sphi 0, %s28
      %s43 = sphi 0, %s29
      %s49 = sphi 0, %s51
      %s52 = sphi 0, %s49
      %s53 = sphi 0, %s52
      %s69 = sphi 0, %s53
      %s75 = sphi 0, %s77
      %s78 = sphi 0, %s75
      %s79 = sphi 0, %s78
      %s95 = sphi 0, %s79
      %s101 = sphi 0, %s103
      %s104 = sphi 0, %s101
      %s105 = sphi 0, %s104
      %s121 = sphi 0, %s105
      %s127 = sphi 0, %s129
      %s130 = sphi 0, %s127
      %s131 = sphi 0, %s130
      %s147 = sphi 0, %s131
      %s153 = sphi 0, %s155
      %s156 = sphi 0, %s153
      %s157 = sphi 0, %s156
      %s173 = sphi 0, %s157
    $region4: #{tpu_custom_call.1} parent=1 // loop_header_branch
      %21 = sbr.rel (%p19) target = $region8
    $region5: #{tpu_custom_call.1} parent=1 // loop_body
      %s23 = ssub.s32 %s18, 1
      %s24 = ssub.s32 %s18, 2
      %s25 = sadd.s32 %s18, 1
      %s27 = sadd.s32 %s26, 1
      %p30 = scmp.eq.s32.totalorder %s18, 1
      %p31 = scmp.ne.s32.totalorder %s26, %s28
      %p32 = scmp.eq.s32.totalorder %s18, 0
      %p33 = por %p31, %p32
      %p34 = scmp.ne.s32.totalorder %s26, %s28
      %p35 = scmp.eq.s32.totalorder %s23, 1
      %p36 = por %p34, %p35
      %p37 = scmp.ne.s32.totalorder %s28, %s29
      %p38 = scmp.eq.s32.totalorder %s23, 0
      %p39 = por %p37, %p38
      %p40 = scmp.ne.s32.totalorder %s28, %s29
      %p41 = scmp.eq.s32.totalorder %s24, 1
      %p42 = por %p40, %p41
      %p44 = scmp.ne.s32.totalorder %s29, %s43
      %p45 = scmp.eq.s32.totalorder %s24, 0
      %p46 = por %p44, %p45
      %s47 = ssub.s32 %s18, %s25
      %p48 = scmp.eq.s32.totalorder %s47, 0
      %s50 = sadd.s32 %s49, 1
      %s51 = scalar_select %p48, %s49, %s50
      %p54 = pneg %p48
      %p55 = scmp.eq.s32.totalorder %s18, 1
      %p56 = por %p54, %p55
      %p57 = scmp.ne.s32.totalorder %s49, %s52
      %p58 = scmp.eq.s32.totalorder %s18, 0
      %p59 = por %p57, %p58
      %p60 = scmp.ne.s32.totalorder %s49, %s52
      %p61 = scmp.eq.s32.totalorder %s23, 1
      %p62 = por %p60, %p61
      %p63 = scmp.ne.s32.totalorder %s52, %s53
      %p64 = scmp.eq.s32.totalorder %s23, 0
      %p65 = por %p63, %p64
      %p66 = scmp.ne.s32.totalorder %s52, %s53
      %p67 = scmp.eq.s32.totalorder %s24, 1
      %p68 = por %p66, %p67
      %p70 = scmp.ne.s32.totalorder %s53, %s69
      %p71 = scmp.eq.s32.totalorder %s24, 0
      %p72 = por %p70, %p71
      %s73 = ssub.s32 %s18, %s25
      %p74 = scmp.eq.s32.totalorder %s73, 0
      %s76 = sadd.s32 %s75, 1
      %s77 = scalar_select %p74, %s75, %s76
      %p80 = pneg %p74
      %p81 = scmp.eq.s32.totalorder %s18, 1
      %p82 = por %p80, %p81
      %p83 = scmp.ne.s32.totalorder %s75, %s78
      %p84 = scmp.eq.s32.totalorder %s18, 0
      %p85 = por %p83, %p84
      %p86 = scmp.ne.s32.totalorder %s75, %s78
      %p87 = scmp.eq.s32.totalorder %s23, 1
      %p88 = por %p86, %p87
      %p89 = scmp.ne.s32.totalorder %s78, %s79
      %p90 = scmp.eq.s32.totalorder %s23, 0
      %p91 = por %p89, %p90
      %p92 = scmp.ne.s32.totalorder %s78, %s79
      %p93 = scmp.eq.s32.totalorder %s24, 1
      %p94 = por %p92, %p93
      %p96 = scmp.ne.s32.totalorder %s79, %s95
      %p97 = scmp.eq.s32.totalorder %s24, 0
      %p98 = por %p96, %p97
      %s99 = ssub.s32 %s18, %s25
      %p100 = scmp.eq.s32.totalorder %s99, 0
      %s102 = sadd.s32 %s101, 1
      %s103 = scalar_select %p100, %s101, %s102
      %p106 = pneg %p100
      %p107 = scmp.eq.s32.totalorder %s18, 1
      %p108 = por %p106, %p107
      %p109 = scmp.ne.s32.totalorder %s101, %s104
      %p110 = scmp.eq.s32.totalorder %s18, 0
      %p111 = por %p109, %p110
      %p112 = scmp.ne.s32.totalorder %s101, %s104
      %p113 = scmp.eq.s32.totalorder %s23, 1
      %p114 = por %p112, %p113
      %p115 = scmp.ne.s32.totalorder %s104, %s105
      %p116 = scmp.eq.s32.totalorder %s23, 0
      %p117 = por %p115, %p116
      %p118 = scmp.ne.s32.totalorder %s104, %s105
      %p119 = scmp.eq.s32.totalorder %s24, 1
      %p120 = por %p118, %p119
      %p122 = scmp.ne.s32.totalorder %s105, %s121
      %p123 = scmp.eq.s32.totalorder %s24, 0
      %p124 = por %p122, %p123
      %s125 = ssub.s32 %s18, %s25
      %p126 = scmp.eq.s32.totalorder %s125, 0
      %s128 = sadd.s32 %s127, 1
      %s129 = scalar_select %p126, %s127, %s128
      %p132 = pneg %p126
      %p133 = scmp.eq.s32.totalorder %s18, 1
      %p134 = por %p132, %p133
      %p135 = scmp.ne.s32.totalorder %s127, %s130
      %p136 = scmp.eq.s32.totalorder %s18, 0
      %p137 = por %p135, %p136
      %p138 = scmp.ne.s32.totalorder %s127, %s130
      %p139 = scmp.eq.s32.totalorder %s23, 1
      %p140 = por %p138, %p139
      %p141 = scmp.ne.s32.totalorder %s130, %s131
      %p142 = scmp.eq.s32.totalorder %s23, 0
      %p143 = por %p141, %p142
      %p144 = scmp.ne.s32.totalorder %s130, %s131
      %p145 = scmp.eq.s32.totalorder %s24, 1
      %p146 = por %p144, %p145
      %p148 = scmp.ne.s32.totalorder %s131, %s147
      %p149 = scmp.eq.s32.totalorder %s24, 0
      %p150 = por %p148, %p149
      %s151 = ssub.s32 %s18, %s25
      %p152 = scmp.eq.s32.totalorder %s151, 0
      %s154 = sadd.s32 %s153, 1
      %s155 = scalar_select %p152, %s153, %s154
      %p158 = pneg %p152
      %p159 = scmp.eq.s32.totalorder %s18, 1
      %p160 = por %p158, %p159
      %p161 = scmp.ne.s32.totalorder %s153, %s156
      %p162 = scmp.eq.s32.totalorder %s18, 0
      %p163 = por %p161, %p162
      %p164 = scmp.ne.s32.totalorder %s153, %s156
      %p165 = scmp.eq.s32.totalorder %s23, 1
      %p166 = por %p164, %p165
      %p167 = scmp.ne.s32.totalorder %s156, %s157
      %p168 = scmp.eq.s32.totalorder %s23, 0
      %p169 = por %p167, %p168
      %p170 = scmp.ne.s32.totalorder %s156, %s157
      %p171 = scmp.eq.s32.totalorder %s24, 1
      %p172 = por %p170, %p171
      %p174 = scmp.ne.s32.totalorder %s157, %s173
      %p175 = scmp.eq.s32.totalorder %s24, 0
      %p176 = por %p174, %p175
      %p177 = scmp.le.s32.totalorder 1, %s18
      %p178 = scmp.lt.s32.totalorder %s18, 3
      %p179 = pnand %p177, %p178
      %p180 = pneg %p179
      // Predicated region
      $region9: #{tpu_custom_call.1} parent=5 // pred_check
        _
      $region10: #{tpu_custom_call.1} parent=5 // pred_check_branch
        %182 = sbr.rel (%p179) target = $region12
      $region11: #{tpu_custom_call.1} parent=5 // pred_region
        %s183 = ssub.s32 %s18, 1
        // Predicated region
        $region13: #{tpu_custom_call.1} parent=11 // pred_check
          %p184 = pneg %p39
        $region14: #{tpu_custom_call.1} parent=11 // pred_check_branch
          %186 = sbr.rel (%p184) target = $region16
        $region15: #{tpu_custom_call.1} parent=11 // pred_region
          %s188 = ssub.s32 128, 128
          %189 = vsyncadd [#allocation3], %s188
          %s191 = sshll.u32 [#allocation2], 4
          %s192 = int_to_ptr.vmem [resolvable:$true] %s191
          %194 = dma.hbm_to_vmem [thread:$0]  %s0, 128, %s192, [#allocation3]
        $region16: #{tpu_custom_call.1} parent=11 // pred_fallthru
          _
      $region12: #{tpu_custom_call.1} parent=5 // pred_fallthru
        _
      %p195 = scmp.lt.s32.totalorder %s18, 2
      // Predicated region
      $region17: #{tpu_custom_call.1} parent=5 // pred_check
        %p196 = pneg %p195
      $region18: #{tpu_custom_call.1} parent=5 // pred_check_branch
        %198 = sbr.rel (%p196) target = $region20
      $region19: #{tpu_custom_call.1} parent=5 // pred_region
        // Predicated region
        $region21: #{tpu_custom_call.1} parent=19 // pred_check
          %p199 = pneg %p59
        $region22: #{tpu_custom_call.1} parent=19 // pred_check_branch
          %201 = sbr.rel (%p199) target = $region24
        $region23: #{tpu_custom_call.1} parent=19 // pred_region
          %s202 = sand.u32 %s49, 1
          %s203 = scalar_lea.sflag [#allocation6], %s202
          %s204 = sand.u32 %s49, 1
          %s205 = smul.addr %s204, 16
          %s206 = scalar_lea.vmem [#allocation5], %s205
          %s208 = ssub.s32 256, 256
          %209 = vsyncadd %s203, %s208
          %s210 = smul.addr %s18, 128
          %s211 = scalar_lea.hbm %s1, %s210
          %s212 = sshll.u32 %s206, 4
          %s213 = int_to_ptr.vmem [resolvable:$true] %s212
          %218 = dma.hbm_to_vmem [thread:$0]  %s211, 256, %s213, %s203, 256, 128, 8
        $region24: #{tpu_custom_call.1} parent=19 // pred_fallthru
          _
        // Predicated region
        $region25: #{tpu_custom_call.1} parent=19 // pred_check
          %p219 = pneg %p85
        $region26: #{tpu_custom_call.1} parent=19 // pred_check_branch
          %221 = sbr.rel (%p219) target = $region28
        $region27: #{tpu_custom_call.1} parent=19 // pred_region
          %p222 = scmp.lt.s32.totalorder %s18, 1
          %s223 = scalar_select %p222, %s18, 1
          %s224 = scalar_lea.vmem %s2, %s223
        $region28: #{tpu_custom_call.1} parent=19 // pred_fallthru
          _
        // Predicated region
        $region29: #{tpu_custom_call.1} parent=19 // pred_check
          %p225 = pneg %p111
        $region30: #{tpu_custom_call.1} parent=19 // pred_check_branch
          %227 = sbr.rel (%p225) target = $region32
        $region31: #{tpu_custom_call.1} parent=19 // pred_region
          %p228 = scmp.lt.s32.totalorder %s18, 1
          %s229 = scalar_select %p228, %s18, 1
          %s230 = scalar_lea.vmem %s3, %s229
        $region32: #{tpu_custom_call.1} parent=19 // pred_fallthru
          _
        // Predicated region
        $region33: #{tpu_custom_call.1} parent=19 // pred_check
          %p231 = pneg %p137
        $region34: #{tpu_custom_call.1} parent=19 // pred_check_branch
          %233 = sbr.rel (%p231) target = $region36
        $region35: #{tpu_custom_call.1} parent=19 // pred_region
          %p234 = scmp.lt.s32.totalorder %s18, 1
          %s235 = scalar_select %p234, %s18, 1
          %s236 = scalar_lea.vmem %s4, %s235
        $region36: #{tpu_custom_call.1} parent=19 // pred_fallthru
          _
      $region20: #{tpu_custom_call.1} parent=5 // pred_fallthru
        _
      %p237 = scmp.le.s32.totalorder 1, %s18
      %p238 = scmp.lt.s32.totalorder %s18, 3
      %p239 = pnand %p237, %p238
      %p240 = pneg %p239
      // Predicated region
      $region37: #{tpu_custom_call.1} parent=5 // pred_check
        _
      $region38: #{tpu_custom_call.1} parent=5 // pred_check_branch
        %242 = sbr.rel (%p239) target = $region40
      $region39: #{tpu_custom_call.1} parent=5 // pred_region
        %s243 = ssub.s32 %s18, 1
        // Predicated region
        $region41: #{tpu_custom_call.1} parent=39 // pred_check
          %p244 = pneg %p39
        $region42: #{tpu_custom_call.1} parent=39 // pred_check_branch
          %246 = sbr.rel (%p244) target = $region44
        $region43: #{tpu_custom_call.1} parent=39 // pred_region
          %247 = dma.done [#allocation3], 128
        $region44: #{tpu_custom_call.1} parent=39 // pred_fallthru
          _
        %s248 = sand.u32 %s52, 1
        %s249 = scalar_lea.sflag [#allocation6], %s248
        %s250 = sand.u32 %s52, 1
        %s251 = smul.addr %s250, 16
        %s252 = scalar_lea.vmem [#allocation5], %s251
        // Predicated region
        $region45: #{tpu_custom_call.1} parent=39 // pred_check
          %p253 = pneg %p65
        $region46: #{tpu_custom_call.1} parent=39 // pred_check_branch
          %255 = sbr.rel (%p253) target = $region48
        $region47: #{tpu_custom_call.1} parent=39 // pred_region
          %256 = dma.done %s249, 256
        $region48: #{tpu_custom_call.1} parent=39 // pred_fallthru
          _
        %p257 = pneg %p39
        %p258 = pneg %p36
        %s259 = sand.u32 %s52, 1
        %s260 = scalar_lea.sflag [#allocation6], %s259
        %s261 = sand.u32 %s52, 1
        %s262 = smul.addr %s261, 16
        %s263 = scalar_lea.vmem [#allocation5], %s262
        %p264 = pneg %p65
        %p265 = pneg %p62
        %p266 = scmp.lt.s32.totalorder %s23, 1
        %s267 = scalar_select %p266, %s23, 1
        %s268 = scalar_lea.vmem %s2, %s267
        %p269 = pneg %p91
        %p270 = pneg %p88
        %p271 = scmp.lt.s32.totalorder %s23, 1
        %s272 = scalar_select %p271, %s23, 1
        %s273 = scalar_lea.vmem %s3, %s272
        %p274 = pneg %p117
        %p275 = pneg %p114
        %p276 = scmp.lt.s32.totalorder %s23, 1
        %s277 = scalar_select %p276, %s23, 1
        %s278 = scalar_lea.vmem %s4, %s277
        %p279 = pneg %p143
        %p280 = pneg %p140
        %p281 = pneg %p169
        %p282 = pneg %p166
        %s283 = sand.u32 %s156, 1
        %s284 = scalar_lea.sflag [#allocation4], %s283
        %s285 = sand.u32 %s156, 1
        %s286 = smul.addr %s285, 8
        %s287 = scalar_lea.vmem [#allocation7], %s286
        %p288 = scmp.lt.s32.totalorder %s23, 1
        %s289 = scalar_select %p288, %s23, 1
        %s290 = scalar_lea.vmem %s2, %s289
        %p291 = scmp.lt.s32.totalorder %s23, 1
        %s292 = scalar_select %p291, %s23, 1
        %s293 = scalar_lea.vmem %s3, %s292
        %p294 = scmp.lt.s32.totalorder %s23, 1
        %s295 = scalar_select %p294, %s23, 1
        %s296 = scalar_lea.vmem %s4, %s295
        %v297 = vld [vmem:[#allocation2] sm:$0xff]
        %v298 = vld [vmem:[%s252] sm:$0xff]
        %v299 = vld [vmem:[%s252 + $0x8] sm:$0xff]
        %v300 = vld [vmem:[%s290] sm:$0x1]
        %v302 = vlaneseq
        %v303 = vshrl.u32 %v302, 7
        %v304 = vsub.s32 0, %v303
        %v305 = vrot.slane %v300, %v304
        %vm307 = vcmask 130048
        %v309 = vsel %vm307, %v297, 0
        %311 = vmatprep.subr.mxu0 0.0
        %312 = vmatpush1.msra.mxu0 0.0
        %313 = vmatprep.subr.mxu0 0.0
        %314 = vmatpush1.msra.mxu0 0.0
        %315 = vmatprep.subr.mxu0 0.0
        %316 = vmatpush1.msra.mxu0 0.0
        %317 = vmatprep.subr.mxu0 0.0
        %318 = vmatpush1.msra.mxu0 0.0
        %319 = vmatprep.subr.mxu0 0.0
        %320 = vmatpush1.msra.mxu0 0.0
        %321 = vmatprep.subr.mxu0 0.0
        %322 = vmatpush1.msra.mxu0 0.0
        %323 = vmatprep.subr.mxu0 0.0
        %324 = vmatpush1.msra.mxu0 0.0
        %325 = vmatprep.subr.mxu0 0.0
        %326 = vmatpush1.msra.mxu0 0.0
        %327 = vmatprep.subr.mxu0 0.0
        %328 = vmatpush1.msra.mxu0 0.0
        %329 = vmatprep.subr.mxu0 0.0
        %330 = vmatpush1.msra.mxu0 0.0
        %331 = vmatprep.subr.mxu0 0.0
        %332 = vmatpush1.msra.mxu0 0.0
        %333 = vmatprep.subr.mxu0 0.0
        %334 = vmatpush1.msra.mxu0 0.0
        %335 = vmatprep.subr.mxu0 0.0
        %336 = vmatpush1.msra.mxu0 0.0
        %337 = vmatprep.subr.mxu0 0.0
        %338 = vmatpush1.msra.mxu0 0.0
        %339 = vmatprep.subr.mxu0 0.0
        %340 = vmatpush1.msra.mxu0 %v299
        %341 = vmatprep.subr.mxu0 0.0
        %342 = vmatpush1.msra.mxu0 %v298
        %343 = vmatprep.subr.mxu0 0.0
        %344 = vmatpush2.msra.mxu0 0.0
        %345 = vmatprep.subr.mxu0 0.0
        %346 = vmatpush2.msra.mxu0 0.0
        %347 = vmatprep.subr.mxu0 0.0
        %348 = vmatpush2.msra.mxu0 0.0
        %349 = vmatprep.subr.mxu0 0.0
        %350 = vmatpush2.msra.mxu0 0.0
        %351 = vmatprep.subr.mxu0 0.0
        %352 = vmatpush2.msra.mxu0 0.0
        %353 = vmatprep.subr.mxu0 0.0
        %354 = vmatpush2.msra.mxu0 0.0
        %355 = vmatprep.subr.mxu0 0.0
        %356 = vmatpush2.msra.mxu0 0.0
        %357 = vmatprep.subr.mxu0 0.0
        %358 = vmatpush2.msra.mxu0 0.0
        %359 = vmatprep.subr.mxu0 0.0
        %360 = vmatpush2.msra.mxu0 0.0
        %361 = vmatprep.subr.mxu0 0.0
        %362 = vmatpush2.msra.mxu0 0.0
        %363 = vmatprep.subr.mxu0 0.0
        %364 = vmatpush2.msra.mxu0 0.0
        %365 = vmatprep.subr.mxu0 0.0
        %366 = vmatpush2.msra.mxu0 0.0
        %367 = vmatprep.subr.mxu0 0.0
        %368 = vmatpush2.msra.mxu0 0.0
        %369 = vmatprep.subr.mxu0 0.0
        %370 = vmatpush2.msra.mxu0 0.0
        %371 = vmatprep.subr.mxu0 0.0
        %372 = vmatpush2.msra.mxu0 0.0
        %373 = vmatprep.subr.mxu0 0.0
        %374 = vmatpush2.msra.mxu0 0.0
        %375 = vmatprep.mubr.f32.mxu0 0.0
        %376 = vmatmul.mubr.f32.gmra.mxu0 %v309
        %v377 = vpop.f32.mrf.mxu0
        %v378 = vadd.f32 %v305, %v377
        %v379 = vpop.f32.mrf.mxu0
        %380 = vdwg.mxu0
        %v381 = vrot.slane %v378, 4
        %v382 = vadd.f32 %v378, %v381
        %v383 = vrot.slane %v382, 2
        %v384 = vadd.f32 %v382, %v383
        %v385 = vrot.slane %v384, 1
        %v386 = vadd.f32 %v384, %v385
        %v387 = vmul.f32 %v386, 0.125
        %v388 = vsub.f32 %v378, %v387
        %v389 = vmul.f32 %v388, %v388
        %v390 = vrot.slane %v389, 4
        %v391 = vadd.f32 %v389, %v390
        %v392 = vrot.slane %v391, 2
        %v393 = vadd.f32 %v391, %v392
        %v394 = vrot.slane %v393, 1
        %v395 = vadd.f32 %v393, %v394
        %v396 = vmul.f32 %v395, 0.125
        %v397 = vld [vmem:[%s293] sm:$0x1]
        %v398 = vadd.f32 %v396, 1e-05
        %v399 = vrsqrt.pop %v398
        %v400 = vmul.f32 %v397, %v399
        %v402 = vlaneseq
        %v403 = vshrl.u32 %v402, 7
        %v404 = vsub.s32 0, %v403
        %v405 = vrot.slane %v400, %v404
        %v407 = vmul.f32 %v388, %v405
        %v408 = vld [vmem:[%s296] sm:$0x1]
        %v410 = vlaneseq
        %v411 = vshrl.u32 %v410, 7
        %v412 = vsub.s32 0, %v411
        %v413 = vrot.slane %v408, %v412
        %v415 = vadd.f32 %v407, %v413
        %p416 = scmp.ge.s32.totalorder %s23, 1
        // Predicated region
        $region49: #{tpu_custom_call.1} parent=39 // pred_check
          %p417 = pneg %p416
        $region50: #{tpu_custom_call.1} parent=39 // pred_check_branch
          %419 = sbr.rel (%p417) target = $region52
        $region51: #{tpu_custom_call.1} parent=39 // pred_region
          %v420 = vmul.f32 %v415, 0.5
          %v421 = vmul.f32 %v420, 1.442695
          %v422 = vpow.pop %v421
          %423 = vst [vmem:[%s287] sm:$0xff] %v422
        $region52: #{tpu_custom_call.1} parent=39 // pred_fallthru
          _
        %p424 = scmp.lt.s32.totalorder %s23, 1
        // Predicated region
        $region53: #{tpu_custom_call.1} parent=39 // pred_check
          %p425 = pneg %p424
        $region54: #{tpu_custom_call.1} parent=39 // pred_check_branch
          %427 = sbr.rel (%p425) target = $region56
        $region55: #{tpu_custom_call.1} parent=39 // pred_region
          %428 = vst [vmem:[%s287] sm:$0xff] %v415
        $region56: #{tpu_custom_call.1} parent=39 // pred_fallthru
          _
        %s429 = sand.u32 %s156, 1
        %s430 = scalar_lea.sflag [#allocation4], %s429
        %s431 = sand.u32 %s156, 1
        %s432 = smul.addr %s431, 8
        %s433 = scalar_lea.vmem [#allocation7], %s432
        // Predicated region
        $region57: #{tpu_custom_call.1} parent=39 // pred_check
          %p434 = pneg %p166
        $region58: #{tpu_custom_call.1} parent=39 // pred_check_branch
          %436 = sbr.rel (%p434) target = $region60
        $region59: #{tpu_custom_call.1} parent=39 // pred_region
          %s438 = ssub.s32 128, 128
          %439 = vsyncadd %s430, %s438
          %s440 = smul.addr %s23, 128
          %s441 = scalar_lea.hbm %s5, %s440
          %s443 = sshll.u32 %s433, 4
          %s444 = int_to_ptr.vmem [resolvable:$true] %s443
          %446 = dma.vmem_to_hbm [thread:$0]  %s444, 128, %s441, %s430
        $region60: #{tpu_custom_call.1} parent=39 // pred_fallthru
          _
      $region40: #{tpu_custom_call.1} parent=5 // pred_fallthru
        _
      %p447 = scmp.le.s32.totalorder 2, %s18
      // Predicated region
      $region61: #{tpu_custom_call.1} parent=5 // pred_check
        %p448 = pneg %p447
      $region62: #{tpu_custom_call.1} parent=5 // pred_check_branch
        %450 = sbr.rel (%p448) target = $region64
      $region63: #{tpu_custom_call.1} parent=5 // pred_region
        %s451 = ssub.s32 %s18, 2
        // Predicated region
        $region65: #{tpu_custom_call.1} parent=63 // pred_check
          %p452 = pneg %p172
        $region66: #{tpu_custom_call.1} parent=63 // pred_check_branch
          %454 = sbr.rel (%p452) target = $region68
        $region67: #{tpu_custom_call.1} parent=63 // pred_region
          %s455 = sand.u32 %s157, 1
          %s456 = scalar_lea.sflag [#allocation4], %s455
          %s457 = sand.u32 %s157, 1
          %s458 = smul.addr %s457, 8
          %s459 = scalar_lea.vmem [#allocation7], %s458
          %460 = dma.done %s456, 128
        $region68: #{tpu_custom_call.1} parent=63 // pred_fallthru
          _
      $region64: #{tpu_custom_call.1} parent=5 // pred_fallthru
        _
    $region6: #{tpu_custom_call.1} parent=1 // loop_footer
      %s22 = sadd.s32 1, %s18
    $region7: #{tpu_custom_call.1} parent=1 // loop_footer_branch
      %17 = sbr.rel target = $region3
    $region8: #{tpu_custom_call.1} parent=1 // loop_exit
      _
    %461 = vsyncpa [#allocation3], 1
    %s462 = scalar_lea.sflag [#allocation3], 1
    %463 = vsyncpa %s462, 1
    %464 = vsyncpa [#allocation6], 1
    %s465 = scalar_lea.sflag [#allocation6], 1
    %466 = vsyncpa %s465, 1
    %467 = vsyncpa [#allocation4], 1
    %s468 = scalar_lea.sflag [#allocation4], 1
    %469 = vsyncpa %s468, 1

</llo_original>
